<compile_context>
chip_gen: v6e
topology: v6e:2x2x1
jax: 0.10.0
libtpu: 0.0.40
codegen_flags: <defaults>
</compile_context>

<pallas_src>
import numpy as np
import jax
import jax.numpy as jnp
from jax.experimental import pallas as pl
from jax.experimental.pallas import tpu as pltpu


# ----------------------------------------------------------------------------
# Mel filterbank construction (pure numpy, deterministic) — mirrors the module
# ----------------------------------------------------------------------------
def fft_frequencies(sr, n_fft):
    return np.linspace(0, float(sr) / 2, int(1 + n_fft // 2), endpoint=True)


def hz_to_mel(frequencies, htk=False):
    frequencies = np.asanyarray(frequencies, dtype=np.float64)
    if htk:
        return 2595.0 * np.log10(1.0 + frequencies / 700.0)
    f_min = 0.0
    f_sp = 200.0 / 3
    mels = (frequencies - f_min) / f_sp
    min_log_hz = 1000.0
    min_log_mel = (min_log_hz - f_min) / f_sp
    logstep = np.log(6.4) / 27.0
    if frequencies.ndim:
        log_t = frequencies >= min_log_hz
        mels[log_t] = min_log_mel + np.log(frequencies[log_t] / min_log_hz) / logstep
    elif frequencies >= min_log_hz:
        mels = min_log_mel + np.log(frequencies / min_log_hz) / logstep
    return mels


def mel_to_hz(mels, htk=False):
    mels = np.asanyarray(mels, dtype=np.float64)
    if htk:
        return 700.0 * (10.0 ** (mels / 2595.0) - 1.0)
    f_min = 0.0
    f_sp = 200.0 / 3
    freqs = f_min + f_sp * mels
    min_log_hz = 1000.0
    min_log_mel = (min_log_hz - f_min) / f_sp
    logstep = np.log(6.4) / 27.0
    if mels.ndim:
        log_t = mels >= min_log_mel
        freqs[log_t] = min_log_hz * np.exp(logstep * (mels[log_t] - min_log_mel))
    elif mels >= min_log_mel:
        freqs = min_log_hz * np.exp(logstep * (mels - min_log_mel))
    return freqs


def mel_frequencies(n_mels=128, fmin=0.0, fmax=21050.0, htk=False):
    min_mel = hz_to_mel(fmin, htk=htk)
    max_mel = hz_to_mel(fmax, htk=htk)
    mels = np.linspace(min_mel, max_mel, n_mels)
    return mel_to_hz(mels, htk=htk)


def make_mel_weights(sr=44100, n_fft=1024, n_mels=40, fmin=0.0, fmax=None,
                     htk=False, norm=1, dtype=np.float32):
    if fmax is None:
        fmax = float(sr) / 2
    n_mels = int(n_mels)
    weights = np.zeros((n_mels, int(1 + n_fft // 2)), dtype=dtype)
    fftfreqs = fft_frequencies(sr=sr, n_fft=n_fft)
    mel_f = mel_frequencies(n_mels + 2, fmin=fmin, fmax=fmax, htk=htk)
    fdiff = np.diff(mel_f)
    ramps = np.subtract.outer(mel_f, fftfreqs)
    for i in range(n_mels):
        lower = -ramps[i] / fdiff[i]
        upper = ramps[i + 2] / fdiff[i + 1]
        weights[i] = np.maximum(0, np.minimum(lower, upper))
    if norm == 1:
        enorm = 2.0 / (mel_f[2:n_mels + 2] - mel_f[:n_mels])
        weights *= enorm[:, np.newaxis].astype(dtype)
    return weights.astype(dtype)


# ----------------------------------------------------------------------------
# Pallas kernel: per (batch, time-tile)  out[b, :, t0:t0+tT] = W @ spec[b]
# ----------------------------------------------------------------------------
def _mel_kernel(w_ref, s_ref, o_ref):
    # w_ref: (n_mels, F)   s_ref: (F, tT)   o_ref: (n_mels, tT)
    o_ref[...] = jnp.dot(
        w_ref[...], s_ref[...], preferred_element_type=jnp.float32
    ).astype(o_ref.dtype)


def _vmem_budget_bytes(default_bytes=12 * 1024 * 1024):
    """Per-step slab budget (double-buffered in + out), adapted to the chip.

    Uses ~1/4 of physical VMEM capped at 16 MiB so the derived tile is safe on
    v7x (64 MiB physical) and inside v5e's 16 MiB scoped default (we also raise
    vmem_limit_bytes below for headroom).
    """
    try:
        info = pltpu.get_tpu_info()
        cap = getattr(info, "vmem_capacity_bytes", None)
        if cap:
            return int(max(4 << 20, min(cap // 4, 16 << 20)))
    except Exception:
        pass
    return default_bytes


def _choose_t_tile(T, B, n_freq, n_mels, in_bytes, out_bytes, budget_bytes):
    """Lane-dense, VMEM-budget-derived time tile (multiple of 128 when T > 128)."""
    if T <= 128:
        # Full extent is always a legal block shape; only one (ragged) block.
        return T
    # Per time column: double-buffered input slab + double-buffered output slab.
    per_col = 2 * (in_bytes * n_freq + out_bytes * n_mels)
    tT = max(128, (budget_bytes // per_col) // 128 * 128)
    if B == 1:
        # Guarantee >= 2 blocks along a parallel grid axis so v7x's second
        # TensorCore gets work (mem-bound kernel: each core has its own DMA).
        half = -(-T // 2)
        half = -(-half // 128) * 128
        tT = min(tT, half)
    if tT >= T:
        # Whole (F, T) plane of one batch in a single contiguous DMA.
        return T
    return tT


def melspectrogram_forward(weights, spectrogram, *, use_bf16=False):
    """weights: (n_mels, F) f32; spectrogram: (B, F, T) f32 -> (B, n_mels, T) f32."""
    B, F_, T = spectrogram.shape
    M = weights.shape[0]
    assert weights.shape == (M, F_)
    out_dtype = jnp.float32

    if use_bf16:
        # Halves dominant HBM read traffic; MXU-native, f32 accumulation.
        weights = weights.astype(jnp.bfloat16)
        spectrogram = spectrogram.astype(jnp.bfloat16)
    in_bytes = jnp.dtype(spectrogram.dtype).itemsize
    out_bytes = jnp.dtype(out_dtype).itemsize

    budget = _vmem_budget_bytes()
    tT = _choose_t_tile(T, B, F_, M, in_bytes, out_bytes, budget)
    grid = (B, pl.cdiv(T, tT))

    cost = pl.CostEstimate(
        flops=2 * B * M * F_ * T,
        transcendentals=0,
        bytes_accessed=in_bytes * (B * F_ * T + M * F_) + out_bytes * (B * M * T),
    )

    # TODO(synk): for a tiny-T / very-large-B regime (T <= 2*tT, B >> 1), pack
    # several batches per grid step (BlockSpec((bB, F, tT), ...) + einsum) to
    # amortize the ~0.35 us per-step overhead; not needed for this module's shapes.
    return pl.pallas_call(
        _mel_kernel,
        out_shape=jax.ShapeDtypeStruct((B, M, T), out_dtype),
        grid=grid,
        in_specs=[
            # Filterbank: constant block index -> DMA'd once, stays resident.
            pl.BlockSpec((M, F_), lambda b, t: (0, 0)),
            # One (F, tT) time-slab per step; leading batch dim squeezed.
            pl.BlockSpec((None, F_, tT), lambda b, t: (b, 0, t)),
        ],
        out_specs=pl.BlockSpec((None, M, tT), lambda b, t: (b, 0, t)),
        compiler_params=pltpu.CompilerParams(
            # Both axes independent -> shardable across v7x's 2 TensorCores.
            dimension_semantics=("parallel", "parallel"),
            # Headroom over v5e's 16 MiB scoped default; safe on every gen
            # (<= half of v7x's 64 MiB physical VMEM).
            vmem_limit_bytes=32 * 1024 * 1024,
        ),
        cost_estimate=cost,
    )(weights, spectrogram)


if __name__ == "__main__":
    # Deterministic example consistent with the module:
    # sr=16000, n_fft=256 -> F = 129 freq bins, n_mels=40, batch=2, T=1024 frames.
    sr, n_fft, n_mels = 16000, 256, 40
    B, T = 2, 1024
    F_bins = 1 + n_fft // 2

    weights_np = make_mel_weights(sr=sr, n_fft=n_fft, n_mels=n_mels)
    weights = jnp.asarray(weights_np, dtype=jnp.float32)

    key = jax.random.PRNGKey(0)
    # A spectrogram is non-negative; use abs of normal draws.
    spec = jnp.abs(jax.random.normal(key, (B, F_bins, T), dtype=jnp.float32))

    out = melspectrogram_forward(weights, spec)
    out = jax.block_until_ready(out)

    # Reference check (plain JAX einsum == PyTorch conv2d semantics).
    ref = jnp.einsum("mf,bft->bmt", weights, spec)
    assert out.shape == (B, n_mels, T)
    np.testing.assert_allclose(np.asarray(out), np.asarray(ref), rtol=1e-5, atol=1e-5)

    print("KERNEL_OK")
</pallas_src>

<mosaic_0001>
module attributes {stable_mosaic.version = 11 : i64} {
  func.func @_mel_kernel(%arg0: i32, %arg1: i32, %arg2: memref<40x129xf32, #tpu.memory_space<vmem>>, %arg3: memref<1x129x1024xf32, #tpu.memory_space<vmem>>, %arg4: memref<1x40x1024xf32, #tpu.memory_space<vmem>>) attributes {dimension_semantics = [#tpu.dimension_semantics<parallel>, #tpu.dimension_semantics<parallel>], iteration_bounds = array<i64: 2, 1>, scalar_prefetch = 0 : i64, scratch_operands = 0 : i64, tpu.core_type = #tpu.core_type<tc>, window_params = [{pipeline_mode = #tpu.pipeline_mode<synchronous>, transform_indices = @transform_0, window_bounds = array<i64: 40, 129>}, {transform_indices = @transform_1, window_bounds = array<i64: 1, 129, 1024>}, {transform_indices = @transform_2, window_bounds = array<i64: 1, 40, 1024>}]} {
    %c0 = arith.constant 0 : index
    %c0_0 = arith.constant 0 : index
    %0 = vector.load %arg2[%c0, %c0_0] : memref<40x129xf32, #tpu.memory_space<vmem>>, vector<40x129xf32>
    %c0_1 = arith.constant 0 : index
    %c0_2 = arith.constant 0 : index
    %c0_3 = arith.constant 0 : index
    %1 = vector.load %arg3[%c0_1, %c0_2, %c0_3] : memref<1x129x1024xf32, #tpu.memory_space<vmem>>, vector<1x129x1024xf32>
    %2 = vector.shape_cast %1 : vector<1x129x1024xf32> to vector<129x1024xf32>
    %cst = arith.constant dense<0.000000e+00> : vector<40x1024xf32>
    %3 = tpu.matmul %0, %2, %cst {dimension_numbers = #tpu.dot_dimension_numbers<[1], [0], [0], [1], [0, 0, 1, 1], [], []>} : vector<40x129xf32>, vector<129x1024xf32>, vector<40x1024xf32> -> vector<40x1024xf32>
    %c0_4 = arith.constant 0 : index
    %c0_5 = arith.constant 0 : index
    %c0_6 = arith.constant 0 : index
    %4 = vector.load %arg4[%c0_4, %c0_5, %c0_6] : memref<1x40x1024xf32, #tpu.memory_space<vmem>>, vector<1x40x1024xf32>
    %5 = vector.shape_cast %4 : vector<1x40x1024xf32> to vector<40x1024xf32>
    %6 = vector.shape_cast %3 : vector<40x1024xf32> to vector<1x40x1024xf32>
    tpu.vector_store %arg4[%c0_4, %c0_5, %c0_6], %6 {strides = array<i32>} : memref<1x40x1024xf32, #tpu.memory_space<vmem>>, vector<1x40x1024xf32>,
    return
  }
  func.func @transform_0(%arg0: i32, %arg1: i32) -> (i32, i32) {
    %c0_i32 = arith.constant 0 : i32
    %c0_i32_0 = arith.constant 0 : i32
    %c0_i32_1 = arith.constant 0 : i32
    return %c0_i32, %c0_i32_0 : i32, i32
  }
  func.func @transform_1(%arg0: i32, %arg1: i32) -> (i32, i32, i32) {
    %c0_i32 = arith.constant 0 : i32
    %c0_i32_0 = arith.constant 0 : i32
    return %arg0, %c0_i32, %arg1 : i32, i32, i32
  }
  func.func @transform_2(%arg0: i32, %arg1: i32) -> (i32, i32, i32) {
    %c0_i32 = arith.constant 0 : i32
    %c0_i32_0 = arith.constant 0 : i32
    return %arg0, %c0_i32, %arg1 : i32, i32, i32
  }
}

</mosaic_0001>

<llo_original>
// kernel: tpu_custom_call.1
$region0: #{tpu_custom_call.1}
  #allocation0 [shape = 'u32[]', space=smem, size = 0x4, offset = 0x4, fixed_abs, tag = 'smem constant byte address 0x4 - core index']
  #allocation1 [shape = 'u32[144,128]{1,0:T(1,128)}', space=vmem, size = 0x12000, scoped, tag = 'internal scratch']
  %s0 = inlined_call_operand.vmem [shape: f32[40,129], index: 0, kind: input, shape index: {}]
  %s1 = inlined_call_operand.vmem [shape: f32[2,129,1024], index: 1, kind: input, shape index: {}]
  %s2 = inlined_call_operand.hbm [shape: f32[2,40,1024], index: 2, kind: output, shape index: {}]
  %s3 = sld [smem:[#allocation0]]
  $region41: #{tpu_custom_call.1} parent=0
    _
  %s5 = ssub.s32 1, %s3
  %s6 = scalar_select 0, %s5, %s3
  $region1: #{tpu_custom_call.1} parent=0
    #allocation2 [shape = 'u8[327680]{0}', space=vmem, size = 0x50000, scoped, tag = 'output window, operand 0']
    #allocation3 [shape = 's32[2]{0}', space=sflag, size = 0x8, scoped, tag = 'scoped memory for tpu_custom_call.1']
    %7 = vsyncpa [#allocation3], 0
    %s8 = scalar_lea.sflag [#allocation3], 1
    %9 = vsyncpa %s8, 0
    loop: start=0, step=1, limit=4
    $region2: #{tpu_custom_call.1} parent=1 // loop_pre_header
      _
    $region3: #{tpu_custom_call.1} parent=1 // loop_header
      %s11 = sphi 0, %s15
      %p12 = scmp.ge.s32.totalorder %s11, 4
      %s18 = sphi 0, %s30
      %s19 = sphi 0, %s26
      %s20 = sphi 0, %s18
      %s21 = sphi 0, %s19
      %s22 = sphi 0, %s20
      %s23 = sphi 0, %s21
      %s31 = sphi 0, %s31
      %s33 = sphi 0, %s31
      %s34 = sphi 0, %s33
      %s48 = sphi 0, %s34
      %s56 = sphi 0, %s58
      %s59 = sphi 0, %s56
      %s60 = sphi 0, %s59
      %s76 = sphi 0, %s60
      %s84 = sphi 0, %s86
      %s87 = sphi 0, %s84
      %s88 = sphi 0, %s87
      %s104 = sphi 0, %s88
    $region4: #{tpu_custom_call.1} parent=1 // loop_header_branch
      %14 = sbr.rel (%p12) target = $region8
    $region5: #{tpu_custom_call.1} parent=1 // loop_body
      %s16 = ssub.s32 %s11, 1
      %s17 = ssub.s32 %s11, 2
      %s24 = sadd.s32 1, %s19
      %p25 = scmp.ge.s32.totalorder %s24, 1
      %s26 = scalar_select %p25, 0, %s24
      %s27 = sadd.s32 1, %s18
      %s28 = scalar_select %p25, %s27, %s18
      %p29 = scmp.ge.s32.totalorder %s28, 2
      %s30 = scalar_select %p29, 0, %s28
      %s32 = sadd.s32 %s31, 1
      %p35 = scmp.eq.s32.totalorder %s11, 1
      %p36 = scmp.ne.s32.totalorder %s31, %s33
      %p37 = scmp.eq.s32.totalorder %s11, 0
      %p38 = por %p36, %p37
      %p39 = scmp.ne.s32.totalorder %s31, %s33
      %p40 = scmp.eq.s32.totalorder %s16, 1
      %p41 = por %p39, %p40
      %p42 = scmp.ne.s32.totalorder %s33, %s34
      %p43 = scmp.eq.s32.totalorder %s16, 0
      %p44 = por %p42, %p43
      %p45 = scmp.ne.s32.totalorder %s33, %s34
      %p46 = scmp.eq.s32.totalorder %s17, 1
      %p47 = por %p45, %p46
      %p49 = scmp.ne.s32.totalorder %s34, %s48
      %p50 = scmp.eq.s32.totalorder %s17, 0
      %p51 = por %p49, %p50
      %s52 = ssub.s32 %s18, %s30
      %s53 = ssub.s32 %s19, %s26
      %s54 = sor.u32 %s52, %s53
      %p55 = scmp.eq.s32.totalorder %s54, 0
      %s57 = sadd.s32 %s56, 1
      %s58 = scalar_select %p55, %s56, %s57
      %p61 = pneg %p55
      %p62 = scmp.eq.s32.totalorder %s11, 1
      %p63 = por %p61, %p62
      %p64 = scmp.ne.s32.totalorder %s56, %s59
      %p65 = scmp.eq.s32.totalorder %s11, 0
      %p66 = por %p64, %p65
      %p67 = scmp.ne.s32.totalorder %s56, %s59
      %p68 = scmp.eq.s32.totalorder %s16, 1
      %p69 = por %p67, %p68
      %p70 = scmp.ne.s32.totalorder %s59, %s60
      %p71 = scmp.eq.s32.totalorder %s16, 0
      %p72 = por %p70, %p71
      %p73 = scmp.ne.s32.totalorder %s59, %s60
      %p74 = scmp.eq.s32.totalorder %s17, 1
      %p75 = por %p73, %p74
      %p77 = scmp.ne.s32.totalorder %s60, %s76
      %p78 = scmp.eq.s32.totalorder %s17, 0
      %p79 = por %p77, %p78
      %s80 = ssub.s32 %s18, %s30
      %s81 = ssub.s32 %s19, %s26
      %s82 = sor.u32 %s80, %s81
      %p83 = scmp.eq.s32.totalorder %s82, 0
      %s85 = sadd.s32 %s84, 1
      %s86 = scalar_select %p83, %s84, %s85
      %p89 = pneg %p83
      %p90 = scmp.eq.s32.totalorder %s11, 1
      %p91 = por %p89, %p90
      %p92 = scmp.ne.s32.totalorder %s84, %s87
      %p93 = scmp.eq.s32.totalorder %s11, 0
      %p94 = por %p92, %p93
      %p95 = scmp.ne.s32.totalorder %s84, %s87
      %p96 = scmp.eq.s32.totalorder %s16, 1
      %p97 = por %p95, %p96
      %p98 = scmp.ne.s32.totalorder %s87, %s88
      %p99 = scmp.eq.s32.totalorder %s16, 0
      %p100 = por %p98, %p99
      %p101 = scmp.ne.s32.totalorder %s87, %s88
      %p102 = scmp.eq.s32.totalorder %s17, 1
      %p103 = por %p101, %p102
      %p105 = scmp.ne.s32.totalorder %s88, %s104
      %p106 = scmp.eq.s32.totalorder %s17, 0
      %p107 = por %p105, %p106
      %p108 = scmp.le.s32.totalorder 1, %s11
      %p109 = scmp.lt.s32.totalorder %s11, 3
      %p110 = pnand %p108, %p109
      %p111 = pneg %p110
      // Predicated region
      $region9: #{tpu_custom_call.1} parent=5 // pred_check
        _
      $region10: #{tpu_custom_call.1} parent=5 // pred_check_branch
        %113 = sbr.rel (%p110) target = $region12
      $region11: #{tpu_custom_call.1} parent=5 // pred_region
        %s114 = ssub.s32 %s11, 1
        // Predicated region
        $region13: #{tpu_custom_call.1} parent=11 // pred_check
          %p115 = pneg %p44
        $region14: #{tpu_custom_call.1} parent=11 // pred_check_branch
          %117 = sbr.rel (%p115) target = $region16
        $region15: #{tpu_custom_call.1} parent=11 // pred_region
          _
        $region16: #{tpu_custom_call.1} parent=11 // pred_fallthru
          _
      $region12: #{tpu_custom_call.1} parent=5 // pred_fallthru
        _
      %p118 = scmp.lt.s32.totalorder %s11, 2
      // Predicated region
      $region17: #{tpu_custom_call.1} parent=5 // pred_check
        %p119 = pneg %p118
      $region18: #{tpu_custom_call.1} parent=5 // pred_check_branch
        %121 = sbr.rel (%p119) target = $region20
      $region19: #{tpu_custom_call.1} parent=5 // pred_region
        // Predicated region
        $region21: #{tpu_custom_call.1} parent=19 // pred_check
          %p122 = pneg %p66
        $region22: #{tpu_custom_call.1} parent=19 // pred_check_branch
          %124 = sbr.rel (%p122) target = $region24
        $region23: #{tpu_custom_call.1} parent=19 // pred_region
          %s125 = smul.u32 8, %s19
          %p126 = scmp.lt.s32.totalorder %s18, 1
          %s127 = scalar_select %p126, %s18, 1
          %p128 = scmp.lt.s32.totalorder %s125, 7
          %s129 = scalar_select %p128, %s125, 7
          %s130 = smul.addr %s127, 136
          %s131 = sadd.s32 %s129, %s130
          %s132 = smul.addr %s131, 8
          %s133 = scalar_lea.vmem %s1, %s132
          %s134 = smul.u32 8, %s19
        $region24: #{tpu_custom_call.1} parent=19 // pred_fallthru
          _
      $region20: #{tpu_custom_call.1} parent=5 // pred_fallthru
        _
      %p135 = scmp.le.s32.totalorder 1, %s11
      %p136 = scmp.lt.s32.totalorder %s11, 3
      %p137 = pnand %p135, %p136
      %p138 = pneg %p137
      // Predicated region
      $region25: #{tpu_custom_call.1} parent=5 // pred_check
        _
      $region26: #{tpu_custom_call.1} parent=5 // pred_check_branch
        %140 = sbr.rel (%p137) target = $region28
      $region27: #{tpu_custom_call.1} parent=5 // pred_region
        %s141 = ssub.s32 %s11, 1
        %p142 = pneg %p44
        %p143 = pneg %p41
        %s144 = smul.u32 8, %s21
        %p145 = scmp.lt.s32.totalorder %s20, 1
        %s146 = scalar_select %p145, %s20, 1
        %p147 = scmp.lt.s32.totalorder %s144, 7
        %s148 = scalar_select %p147, %s144, 7
        %s149 = smul.addr %s146, 136
        %s150 = sadd.s32 %s148, %s149
        %s151 = smul.addr %s150, 8
        %s152 = scalar_lea.vmem %s1, %s151
        %p153 = pneg %p72
        %p154 = pneg %p69
        %p155 = pneg %p100
        %p156 = pneg %p97
        %s157 = sand.u32 %s87, 1
        %s158 = scalar_lea.sflag [#allocation3], %s157
        %s159 = sand.u32 %s87, 1
        %s160 = smul.addr %s159, 320
        %s161 = scalar_lea.vmem [#allocation2], %s160
        %s162 = smul.u32 8, %s21
        %p163 = scmp.lt.s32.totalorder %s20, 1
        %s164 = scalar_select %p163, %s20, 1
        %p165 = scmp.lt.s32.totalorder %s162, 7
        %s166 = scalar_select %p165, %s162, 7
        %s167 = smul.addr %s164, 136
        %s168 = sadd.s32 %s166, %s167
        %s169 = smul.addr %s168, 8
        %s170 = scalar_lea.vmem %s1, %s169
        %s171 = smul.u32 8, %s21
        %s172 = smul.u32 8, %s21
        %v173 = vld [vmem:[%s0] sm:$0xff]
        %v174 = vld [vmem:[%s0 + $0x8] sm:$0xff]
        %v175 = vld [vmem:[%s0 + $0x10] sm:$0xff]
        %v176 = vld [vmem:[%s0 + $0x18] sm:$0xff]
        %v177 = vld [vmem:[%s0 + $0x20] sm:$0xff]
        %v178 = vld [vmem:[%s0 + $0x28] sm:$0xff]
        %v179 = vld [vmem:[%s0 + $0x30] sm:$0xff]
        %v180 = vld [vmem:[%s0 + $0x38] sm:$0xff]
        %v181 = vld [vmem:[%s0 + $0x40] sm:$0xff]
        %v182 = vld [vmem:[%s0 + $0x48] sm:$0xff]
        %v183 = vld [vmem:[%s170] sm:$0xff]
        %v184 = vld [vmem:[%s170 + $0x8] sm:$0xff]
        %v185 = vld [vmem:[%s170 + $0x10] sm:$0xff]
        %v186 = vld [vmem:[%s170 + $0x18] sm:$0xff]
        %v187 = vld [vmem:[%s170 + $0x20] sm:$0xff]
        %v188 = vld [vmem:[%s170 + $0x28] sm:$0xff]
        %v189 = vld [vmem:[%s170 + $0x30] sm:$0xff]
        %v190 = vld [vmem:[%s170 + $0x38] sm:$0xff]
        %v191 = vld [vmem:[%s170 + $0x40] sm:$0xff]
        %v192 = vld [vmem:[%s170 + $0x48] sm:$0xff]
        %v193 = vld [vmem:[%s170 + $0x50] sm:$0xff]
        %v194 = vld [vmem:[%s170 + $0x58] sm:$0xff]
        %v195 = vld [vmem:[%s170 + $0x60] sm:$0xff]
        %v196 = vld [vmem:[%s170 + $0x68] sm:$0xff]
        %v197 = vld [vmem:[%s170 + $0x70] sm:$0xff]
        %v198 = vld [vmem:[%s170 + $0x78] sm:$0xff]
        %v199 = vld [vmem:[%s170 + $0x80] sm:$0xff]
        %v200 = vld [vmem:[%s170 + $0x88] sm:$0xff]
        %v201 = vld [vmem:[%s170 + $0x90] sm:$0xff]
        %v202 = vld [vmem:[%s170 + $0x98] sm:$0xff]
        %v203 = vld [vmem:[%s170 + $0xa0] sm:$0xff]
        %v204 = vld [vmem:[%s170 + $0xa8] sm:$0xff]
        %v205 = vld [vmem:[%s170 + $0xb0] sm:$0xff]
        %v206 = vld [vmem:[%s170 + $0xb8] sm:$0xff]
        %v207 = vld [vmem:[%s170 + $0xc0] sm:$0xff]
        %v208 = vld [vmem:[%s170 + $0xc8] sm:$0xff]
        %v209 = vld [vmem:[%s170 + $0xd0] sm:$0xff]
        %v210 = vld [vmem:[%s170 + $0xd8] sm:$0xff]
        %v211 = vld [vmem:[%s170 + $0xe0] sm:$0xff]
        %v212 = vld [vmem:[%s170 + $0xe8] sm:$0xff]
        %v213 = vld [vmem:[%s170 + $0xf0] sm:$0xff]
        %v214 = vld [vmem:[%s170 + $0xf8] sm:$0xff]
        %v215 = vld [vmem:[%s170 + $0x100] sm:$0xff]
        %v216 = vld [vmem:[%s170 + $0x108] sm:$0xff]
        %v217 = vld [vmem:[%s170 + $0x110] sm:$0xff]
        %v218 = vld [vmem:[%s170 + $0x118] sm:$0xff]
        %v219 = vld [vmem:[%s170 + $0x120] sm:$0xff]
        %v220 = vld [vmem:[%s170 + $0x128] sm:$0xff]
        %v221 = vld [vmem:[%s170 + $0x130] sm:$0xff]
        %v222 = vld [vmem:[%s170 + $0x138] sm:$0xff]
        %v223 = vld [vmem:[%s170 + $0x140] sm:$0xff]
        %v224 = vld [vmem:[%s170 + $0x148] sm:$0xff]
        %v225 = vld [vmem:[%s170 + $0x150] sm:$0xff]
        %v226 = vld [vmem:[%s170 + $0x158] sm:$0xff]
        %v227 = vld [vmem:[%s170 + $0x160] sm:$0xff]
        %v228 = vld [vmem:[%s170 + $0x168] sm:$0xff]
        %v229 = vld [vmem:[%s170 + $0x170] sm:$0xff]
        %v230 = vld [vmem:[%s170 + $0x178] sm:$0xff]
        %v231 = vld [vmem:[%s170 + $0x180] sm:$0xff]
        %v232 = vld [vmem:[%s170 + $0x188] sm:$0xff]
        %v233 = vld [vmem:[%s170 + $0x190] sm:$0xff]
        %v234 = vld [vmem:[%s170 + $0x198] sm:$0xff]
        %v235 = vld [vmem:[%s170 + $0x1a0] sm:$0xff]
        %v236 = vld [vmem:[%s170 + $0x1a8] sm:$0xff]
        %v237 = vld [vmem:[%s170 + $0x1b0] sm:$0xff]
        %v238 = vld [vmem:[%s170 + $0x1b8] sm:$0xff]
        %v239 = vld [vmem:[%s170 + $0x1c0] sm:$0xff]
        %v240 = vld [vmem:[%s170 + $0x1c8] sm:$0xff]
        %v241 = vld [vmem:[%s170 + $0x1d0] sm:$0xff]
        %v242 = vld [vmem:[%s170 + $0x1d8] sm:$0xff]
        %v243 = vld [vmem:[%s170 + $0x1e0] sm:$0xff]
        %v244 = vld [vmem:[%s170 + $0x1e8] sm:$0xff]
        %v245 = vld [vmem:[%s170 + $0x1f0] sm:$0xff]
        %v246 = vld [vmem:[%s170 + $0x1f8] sm:$0xff]
        %v247 = vld [vmem:[%s170 + $0x200] sm:$0xff]
        %v248 = vld [vmem:[%s170 + $0x208] sm:$0xff]
        %v249 = vld [vmem:[%s170 + $0x210] sm:$0xff]
        %v250 = vld [vmem:[%s170 + $0x218] sm:$0xff]
        %v251 = vld [vmem:[%s170 + $0x220] sm:$0xff]
        %v252 = vld [vmem:[%s170 + $0x228] sm:$0xff]
        %v253 = vld [vmem:[%s170 + $0x230] sm:$0xff]
        %v254 = vld [vmem:[%s170 + $0x238] sm:$0xff]
        %v255 = vld [vmem:[%s170 + $0x240] sm:$0xff]
        %v256 = vld [vmem:[%s170 + $0x248] sm:$0xff]
        %v257 = vld [vmem:[%s170 + $0x250] sm:$0xff]
        %v258 = vld [vmem:[%s170 + $0x258] sm:$0xff]
        %v259 = vld [vmem:[%s170 + $0x260] sm:$0xff]
        %v260 = vld [vmem:[%s170 + $0x268] sm:$0xff]
        %v261 = vld [vmem:[%s170 + $0x270] sm:$0xff]
        %v262 = vld [vmem:[%s170 + $0x278] sm:$0xff]
        %v263 = vld [vmem:[%s170 + $0x280] sm:$0xff]
        %v264 = vld [vmem:[%s170 + $0x288] sm:$0xff]
        %v265 = vld [vmem:[%s170 + $0x290] sm:$0xff]
        %v266 = vld [vmem:[%s170 + $0x298] sm:$0xff]
        %v267 = vld [vmem:[%s170 + $0x2a0] sm:$0xff]
        %v268 = vld [vmem:[%s170 + $0x2a8] sm:$0xff]
        %v269 = vld [vmem:[%s170 + $0x2b0] sm:$0xff]
        %v270 = vld [vmem:[%s170 + $0x2b8] sm:$0xff]
        %v271 = vld [vmem:[%s170 + $0x2c0] sm:$0xff]
        %v272 = vld [vmem:[%s170 + $0x2c8] sm:$0xff]
        %v273 = vld [vmem:[%s170 + $0x2d0] sm:$0xff]
        %v274 = vld [vmem:[%s170 + $0x2d8] sm:$0xff]
        %v275 = vld [vmem:[%s170 + $0x2e0] sm:$0xff]
        %v276 = vld [vmem:[%s170 + $0x2e8] sm:$0xff]
        %v277 = vld [vmem:[%s170 + $0x2f0] sm:$0xff]
        %v278 = vld [vmem:[%s170 + $0x2f8] sm:$0xff]
        %v279 = vld [vmem:[%s170 + $0x300] sm:$0xff]
        %v280 = vld [vmem:[%s170 + $0x308] sm:$0xff]
        %v281 = vld [vmem:[%s170 + $0x310] sm:$0xff]
        %v282 = vld [vmem:[%s170 + $0x318] sm:$0xff]
        %v283 = vld [vmem:[%s170 + $0x320] sm:$0xff]
        %v284 = vld [vmem:[%s170 + $0x328] sm:$0xff]
        %v285 = vld [vmem:[%s170 + $0x330] sm:$0xff]
        %v286 = vld [vmem:[%s170 + $0x338] sm:$0xff]
        %v287 = vld [vmem:[%s170 + $0x340] sm:$0xff]
        %v288 = vld [vmem:[%s170 + $0x348] sm:$0xff]
        %v289 = vld [vmem:[%s170 + $0x350] sm:$0xff]
        %v290 = vld [vmem:[%s170 + $0x358] sm:$0xff]
        %v291 = vld [vmem:[%s170 + $0x360] sm:$0xff]
        %v292 = vld [vmem:[%s170 + $0x368] sm:$0xff]
        %v293 = vld [vmem:[%s170 + $0x370] sm:$0xff]
        %v294 = vld [vmem:[%s170 + $0x378] sm:$0xff]
        %v295 = vld [vmem:[%s170 + $0x380] sm:$0xff]
        %v296 = vld [vmem:[%s170 + $0x388] sm:$0xff]
        %v297 = vld [vmem:[%s170 + $0x390] sm:$0xff]
        %v298 = vld [vmem:[%s170 + $0x398] sm:$0xff]
        %v299 = vld [vmem:[%s170 + $0x3a0] sm:$0xff]
        %v300 = vld [vmem:[%s170 + $0x3a8] sm:$0xff]
        %v301 = vld [vmem:[%s170 + $0x3b0] sm:$0xff]
        %v302 = vld [vmem:[%s170 + $0x3b8] sm:$0xff]
        %v303 = vld [vmem:[%s170 + $0x3c0] sm:$0xff]
        %v304 = vld [vmem:[%s170 + $0x3c8] sm:$0xff]
        %v305 = vld [vmem:[%s170 + $0x3d0] sm:$0xff]
        %v306 = vld [vmem:[%s170 + $0x3d8] sm:$0xff]
        %v307 = vld [vmem:[%s170 + $0x3e0] sm:$0xff]
        %v308 = vld [vmem:[%s170 + $0x3e8] sm:$0xff]
        %v309 = vld [vmem:[%s170 + $0x3f0] sm:$0xff]
        %v310 = vld [vmem:[%s170 + $0x3f8] sm:$0xff]
        %v311 = vld [vmem:[%s170 + $0x400] sm:$0x1]
        %v312 = vld [vmem:[%s170 + $0x408] sm:$0x1]
        %v313 = vld [vmem:[%s170 + $0x410] sm:$0x1]
        %v314 = vld [vmem:[%s170 + $0x418] sm:$0x1]
        %v315 = vld [vmem:[%s170 + $0x420] sm:$0x1]
        %v316 = vld [vmem:[%s170 + $0x428] sm:$0x1]
        %v317 = vld [vmem:[%s170 + $0x430] sm:$0x1]
        %v318 = vld [vmem:[%s170 + $0x438] sm:$0x1]
        %vm319 = vcmask 7168
        %v321 = vsel %vm319, %v174, 0
        %v324 = vsel %vm319, %v176, 0
        %v327 = vsel %vm319, %v178, 0
        %v330 = vsel %vm319, %v180, 0
        %v333 = vsel %vm319, %v182, 0
        %vm335 = vcmask 1040384
        %v337 = vsel %vm335, %v311, 0
        %v340 = vsel %vm335, %v312, 0
        %v343 = vsel %vm335, %v313, 0
        %v346 = vsel %vm335, %v314, 0
        %v349 = vsel %vm335, %v315, 0
        %v352 = vsel %vm335, %v316, 0
        %v355 = vsel %vm335, %v317, 0
        %v358 = vsel %vm335, %v318, 0
        %360 = vmatprep.subr.mxu0 %v304
        %361 = vmatpush1.msra.mxu0 %v303
        %362 = vmatprep.subr.mxu0 %v296
        %363 = vmatpush1.msra.mxu0 %v295
        %364 = vmatprep.subr.mxu0 %v288
        %365 = vmatpush1.msra.mxu0 %v287
        %366 = vmatprep.subr.mxu0 %v280
        %367 = vmatpush1.msra.mxu0 %v279
        %368 = vmatprep.subr.mxu0 %v272
        %369 = vmatpush1.msra.mxu0 %v271
        %370 = vmatprep.subr.mxu0 %v264
        %371 = vmatpush1.msra.mxu0 %v263
        %372 = vmatprep.subr.mxu0 %v256
        %373 = vmatpush1.msra.mxu0 %v255
        %374 = vmatprep.subr.mxu0 %v248
        %375 = vmatpush1.msra.mxu0 %v247
        %376 = vmatprep.subr.mxu0 %v240
        %377 = vmatpush1.msra.mxu0 %v239
        %378 = vmatprep.subr.mxu0 %v232
        %379 = vmatpush1.msra.mxu0 %v231
        %380 = vmatprep.subr.mxu0 %v224
        %381 = vmatpush1.msra.mxu0 %v223
        %382 = vmatprep.subr.mxu0 %v216
        %383 = vmatpush1.msra.mxu0 %v215
        %384 = vmatprep.subr.mxu0 %v208
        %385 = vmatpush1.msra.mxu0 %v207
        %386 = vmatprep.subr.mxu0 %v200
        %387 = vmatpush1.msra.mxu0 %v199
        %388 = vmatprep.subr.mxu0 %v192
        %389 = vmatpush1.msra.mxu0 %v191
        %390 = vmatprep.subr.mxu0 %v184
        %391 = vmatpush1.msra.mxu0 %v183
        %392 = vmatprep.subr.mxu0 0.0
        %393 = vmatpush2.msra.mxu0 0.0
        %394 = vmatprep.subr.mxu0 0.0
        %395 = vmatpush2.msra.mxu0 0.0
        %396 = vmatprep.subr.mxu0 0.0
        %397 = vmatpush2.msra.mxu0 0.0
        %398 = vmatprep.subr.mxu0 0.0
        %399 = vmatpush2.msra.mxu0 0.0
        %400 = vmatprep.subr.mxu0 0.0
        %401 = vmatpush2.msra.mxu0 0.0
        %402 = vmatprep.subr.mxu0 0.0
        %403 = vmatpush2.msra.mxu0 0.0
        %404 = vmatprep.subr.mxu0 0.0
        %405 = vmatpush2.msra.mxu0 0.0
        %406 = vmatprep.subr.mxu0 0.0
        %407 = vmatpush2.msra.mxu0 0.0
        %408 = vmatprep.subr.mxu0 0.0
        %409 = vmatpush2.msra.mxu0 0.0
        %410 = vmatprep.subr.mxu0 0.0
        %411 = vmatpush2.msra.mxu0 0.0
        %412 = vmatprep.subr.mxu0 0.0
        %413 = vmatpush2.msra.mxu0 0.0
        %414 = vmatprep.subr.mxu0 0.0
        %415 = vmatpush2.msra.mxu0 0.0
        %416 = vmatprep.subr.mxu0 0.0
        %417 = vmatpush2.msra.mxu0 0.0
        %418 = vmatprep.subr.mxu0 0.0
        %419 = vmatpush2.msra.mxu0 0.0
        %420 = vmatprep.subr.mxu0 0.0
        %421 = vmatpush2.msra.mxu0 0.0
        %422 = vmatprep.subr.mxu0 %v340
        %423 = vmatpush2.msra.mxu0 %v337
        %424 = vmatprep.mubr.f32.mxu0 %v321
        %425 = vmatmul.mubr.f32.gmra.mxu0 %v173
        %v426 = vpop.f32.mrf.mxu0
        %v427 = vadd.f32 0.0, %v426
        %v428 = vpop.f32.mrf.mxu0
        %v429 = vadd.f32 0.0, %v428
        %430 = vmatprep.mubr.f32.mxu0 %v324
        %431 = vmatmul.mubr.f32.gmra.mxu0 %v175
        %v432 = vpop.f32.mrf.mxu0
        %v433 = vadd.f32 0.0, %v432
        %v434 = vpop.f32.mrf.mxu0
        %v435 = vadd.f32 0.0, %v434
        %436 = vmatprep.mubr.f32.mxu0 %v327
        %437 = vmatmul.mubr.f32.gmra.mxu0 %v177
        %v438 = vpop.f32.mrf.mxu0
        %v439 = vadd.f32 0.0, %v438
        %v440 = vpop.f32.mrf.mxu0
        %v441 = vadd.f32 0.0, %v440
        %442 = vmatprep.mubr.f32.mxu0 %v330
        %443 = vmatmul.mubr.f32.gmra.mxu0 %v179
        %v444 = vpop.f32.mrf.mxu0
        %v445 = vadd.f32 0.0, %v444
        %v446 = vpop.f32.mrf.mxu0
        %v447 = vadd.f32 0.0, %v446
        %448 = vmatprep.mubr.f32.mxu0 %v333
        %449 = vmatmul.mubr.f32.gmra.mxu0 %v181
        %v450 = vpop.f32.mrf.mxu0
        %v451 = vadd.f32 0.0, %v450
        %v452 = vpop.f32.mrf.mxu0
        %v453 = vadd.f32 0.0, %v452
        %454 = vdwg.mxu0
        %455 = vmatprep.subr.mxu0 %v306
        %456 = vmatpush1.msra.mxu0 %v305
        %457 = vmatprep.subr.mxu0 %v298
        %458 = vmatpush1.msra.mxu0 %v297
        %459 = vmatprep.subr.mxu0 %v290
        %460 = vmatpush1.msra.mxu0 %v289
        %461 = vmatprep.subr.mxu0 %v282
        %462 = vmatpush1.msra.mxu0 %v281
        %463 = vmatprep.subr.mxu0 %v274
        %464 = vmatpush1.msra.mxu0 %v273
        %465 = vmatprep.subr.mxu0 %v266
        %466 = vmatpush1.msra.mxu0 %v265
        %467 = vmatprep.subr.mxu0 %v258
        %468 = vmatpush1.msra.mxu0 %v257
        %469 = vmatprep.subr.mxu0 %v250
        %470 = vmatpush1.msra.mxu0 %v249
        %471 = vmatprep.subr.mxu0 %v242
        %472 = vmatpush1.msra.mxu0 %v241
        %473 = vmatprep.subr.mxu0 %v234
        %474 = vmatpush1.msra.mxu0 %v233
        %475 = vmatprep.subr.mxu0 %v226
        %476 = vmatpush1.msra.mxu0 %v225
        %477 = vmatprep.subr.mxu0 %v218
        %478 = vmatpush1.msra.mxu0 %v217
        %479 = vmatprep.subr.mxu0 %v210
        %480 = vmatpush1.msra.mxu0 %v209
        %481 = vmatprep.subr.mxu0 %v202
        %482 = vmatpush1.msra.mxu0 %v201
        %483 = vmatprep.subr.mxu0 %v194
        %484 = vmatpush1.msra.mxu0 %v193
        %485 = vmatprep.subr.mxu0 %v186
        %486 = vmatpush1.msra.mxu0 %v185
        %487 = vmatprep.subr.mxu0 0.0
        %488 = vmatpush2.msra.mxu0 0.0
        %489 = vmatprep.subr.mxu0 0.0
        %490 = vmatpush2.msra.mxu0 0.0
        %491 = vmatprep.subr.mxu0 0.0
        %492 = vmatpush2.msra.mxu0 0.0
        %493 = vmatprep.subr.mxu0 0.0
        %494 = vmatpush2.msra.mxu0 0.0
        %495 = vmatprep.subr.mxu0 0.0
        %496 = vmatpush2.msra.mxu0 0.0
        %497 = vmatprep.subr.mxu0 0.0
        %498 = vmatpush2.msra.mxu0 0.0
        %499 = vmatprep.subr.mxu0 0.0
        %500 = vmatpush2.msra.mxu0 0.0
        %501 = vmatprep.subr.mxu0 0.0
        %502 = vmatpush2.msra.mxu0 0.0
        %503 = vmatprep.subr.mxu0 0.0
        %504 = vmatpush2.msra.mxu0 0.0
        %505 = vmatprep.subr.mxu0 0.0
        %506 = vmatpush2.msra.mxu0 0.0
        %507 = vmatprep.subr.mxu0 0.0
        %508 = vmatpush2.msra.mxu0 0.0
        %509 = vmatprep.subr.mxu0 0.0
        %510 = vmatpush2.msra.mxu0 0.0
        %511 = vmatprep.subr.mxu0 0.0
        %512 = vmatpush2.msra.mxu0 0.0
        %513 = vmatprep.subr.mxu0 0.0
        %514 = vmatpush2.msra.mxu0 0.0
        %515 = vmatprep.subr.mxu0 0.0
        %516 = vmatpush2.msra.mxu0 0.0
        %517 = vmatprep.subr.mxu0 %v346
        %518 = vmatpush2.msra.mxu0 %v343
        %519 = vmatprep.mubr.f32.mxu0 %v321
        %520 = vmatmul.mubr.f32.gmra.mxu0 %v173
        %v521 = vpop.f32.mrf.mxu0
        %v522 = vadd.f32 0.0, %v521
        %v523 = vpop.f32.mrf.mxu0
        %v524 = vadd.f32 0.0, %v523
        %525 = vmatprep.mubr.f32.mxu0 %v324
        %526 = vmatmul.mubr.f32.gmra.mxu0 %v175
        %v527 = vpop.f32.mrf.mxu0
        %v528 = vadd.f32 0.0, %v527
        %v529 = vpop.f32.mrf.mxu0
        %v530 = vadd.f32 0.0, %v529
        %531 = vmatprep.mubr.f32.mxu0 %v327
        %532 = vmatmul.mubr.f32.gmra.mxu0 %v177
        %v533 = vpop.f32.mrf.mxu0
        %v534 = vadd.f32 0.0, %v533
        %v535 = vpop.f32.mrf.mxu0
        %v536 = vadd.f32 0.0, %v535
        %537 = vmatprep.mubr.f32.mxu0 %v330
        %538 = vmatmul.mubr.f32.gmra.mxu0 %v179
        %v539 = vpop.f32.mrf.mxu0
        %v540 = vadd.f32 0.0, %v539
        %v541 = vpop.f32.mrf.mxu0
        %v542 = vadd.f32 0.0, %v541
        %543 = vmatprep.mubr.f32.mxu0 %v333
        %544 = vmatmul.mubr.f32.gmra.mxu0 %v181
        %v545 = vpop.f32.mrf.mxu0
        %v546 = vadd.f32 0.0, %v545
        %v547 = vpop.f32.mrf.mxu0
        %v548 = vadd.f32 0.0, %v547
        %549 = vdwg.mxu0
        %550 = vmatprep.subr.mxu0 %v308
        %551 = vmatpush1.msra.mxu0 %v307
        %552 = vmatprep.subr.mxu0 %v300
        %553 = vmatpush1.msra.mxu0 %v299
        %554 = vmatprep.subr.mxu0 %v292
        %555 = vmatpush1.msra.mxu0 %v291
        %556 = vmatprep.subr.mxu0 %v284
        %557 = vmatpush1.msra.mxu0 %v283
        %558 = vmatprep.subr.mxu0 %v276
        %559 = vmatpush1.msra.mxu0 %v275
        %560 = vmatprep.subr.mxu0 %v268
        %561 = vmatpush1.msra.mxu0 %v267
        %562 = vmatprep.subr.mxu0 %v260
        %563 = vmatpush1.msra.mxu0 %v259
        %564 = vmatprep.subr.mxu0 %v252
        %565 = vmatpush1.msra.mxu0 %v251
        %566 = vmatprep.subr.mxu0 %v244
        %567 = vmatpush1.msra.mxu0 %v243
        %568 = vmatprep.subr.mxu0 %v236
        %569 = vmatpush1.msra.mxu0 %v235
        %570 = vmatprep.subr.mxu0 %v228
        %571 = vmatpush1.msra.mxu0 %v227
        %572 = vmatprep.subr.mxu0 %v220
        %573 = vmatpush1.msra.mxu0 %v219
        %574 = vmatprep.subr.mxu0 %v212
        %575 = vmatpush1.msra.mxu0 %v211
        %576 = vmatprep.subr.mxu0 %v204
        %577 = vmatpush1.msra.mxu0 %v203
        %578 = vmatprep.subr.mxu0 %v196
        %579 = vmatpush1.msra.mxu0 %v195
        %580 = vmatprep.subr.mxu0 %v188
        %581 = vmatpush1.msra.mxu0 %v187
        %582 = vmatprep.subr.mxu0 0.0
        %583 = vmatpush2.msra.mxu0 0.0
        %584 = vmatprep.subr.mxu0 0.0
        %585 = vmatpush2.msra.mxu0 0.0
        %586 = vmatprep.subr.mxu0 0.0
        %587 = vmatpush2.msra.mxu0 0.0
        %588 = vmatprep.subr.mxu0 0.0
        %589 = vmatpush2.msra.mxu0 0.0
        %590 = vmatprep.subr.mxu0 0.0
        %591 = vmatpush2.msra.mxu0 0.0
        %592 = vmatprep.subr.mxu0 0.0
        %593 = vmatpush2.msra.mxu0 0.0
        %594 = vmatprep.subr.mxu0 0.0
        %595 = vmatpush2.msra.mxu0 0.0
        %596 = vmatprep.subr.mxu0 0.0
        %597 = vmatpush2.msra.mxu0 0.0
        %598 = vmatprep.subr.mxu0 0.0
        %599 = vmatpush2.msra.mxu0 0.0
        %600 = vmatprep.subr.mxu0 0.0
        %601 = vmatpush2.msra.mxu0 0.0
        %602 = vmatprep.subr.mxu0 0.0
        %603 = vmatpush2.msra.mxu0 0.0
        %604 = vmatprep.subr.mxu0 0.0
        %605 = vmatpush2.msra.mxu0 0.0
        %606 = vmatprep.subr.mxu0 0.0
        %607 = vmatpush2.msra.mxu0 0.0
        %608 = vmatprep.subr.mxu0 0.0
        %609 = vmatpush2.msra.mxu0 0.0
        %610 = vmatprep.subr.mxu0 0.0
        %611 = vmatpush2.msra.mxu0 0.0
        %612 = vmatprep.subr.mxu0 %v352
        %613 = vmatpush2.msra.mxu0 %v349
        %614 = vmatprep.mubr.f32.mxu0 %v321
        %615 = vmatmul.mubr.f32.gmra.mxu0 %v173
        %v616 = vpop.f32.mrf.mxu0
        %v617 = vadd.f32 0.0, %v616
        %v618 = vpop.f32.mrf.mxu0
        %v619 = vadd.f32 0.0, %v618
        %620 = vmatprep.mubr.f32.mxu0 %v324
        %621 = vmatmul.mubr.f32.gmra.mxu0 %v175
        %v622 = vpop.f32.mrf.mxu0
        %v623 = vadd.f32 0.0, %v622
        %v624 = vpop.f32.mrf.mxu0
        %v625 = vadd.f32 0.0, %v624
        %626 = vmatprep.mubr.f32.mxu0 %v327
        %627 = vmatmul.mubr.f32.gmra.mxu0 %v177
        %v628 = vpop.f32.mrf.mxu0
        %v629 = vadd.f32 0.0, %v628
        %v630 = vpop.f32.mrf.mxu0
        %v631 = vadd.f32 0.0, %v630
        %632 = vmatprep.mubr.f32.mxu0 %v330
        %633 = vmatmul.mubr.f32.gmra.mxu0 %v179
        %v634 = vpop.f32.mrf.mxu0
        %v635 = vadd.f32 0.0, %v634
        %v636 = vpop.f32.mrf.mxu0
        %v637 = vadd.f32 0.0, %v636
        %638 = vmatprep.mubr.f32.mxu0 %v333
        %639 = vmatmul.mubr.f32.gmra.mxu0 %v181
        %v640 = vpop.f32.mrf.mxu0
        %v641 = vadd.f32 0.0, %v640
        %v642 = vpop.f32.mrf.mxu0
        %v643 = vadd.f32 0.0, %v642
        %644 = vdwg.mxu0
        %645 = vmatprep.subr.mxu0 %v310
        %646 = vmatpush1.msra.mxu0 %v309
        %647 = vmatprep.subr.mxu0 %v302
        %648 = vmatpush1.msra.mxu0 %v301
        %649 = vmatprep.subr.mxu0 %v294
        %650 = vmatpush1.msra.mxu0 %v293
        %651 = vmatprep.subr.mxu0 %v286
        %652 = vmatpush1.msra.mxu0 %v285
        %653 = vmatprep.subr.mxu0 %v278
        %654 = vmatpush1.msra.mxu0 %v277
        %655 = vmatprep.subr.mxu0 %v270
        %656 = vmatpush1.msra.mxu0 %v269
        %657 = vmatprep.subr.mxu0 %v262
        %658 = vmatpush1.msra.mxu0 %v261
        %659 = vmatprep.subr.mxu0 %v254
        %660 = vmatpush1.msra.mxu0 %v253
        %661 = vmatprep.subr.mxu0 %v246
        %662 = vmatpush1.msra.mxu0 %v245
        %663 = vmatprep.subr.mxu0 %v238
        %664 = vmatpush1.msra.mxu0 %v237
        %665 = vmatprep.subr.mxu0 %v230
        %666 = vmatpush1.msra.mxu0 %v229
        %667 = vmatprep.subr.mxu0 %v222
        %668 = vmatpush1.msra.mxu0 %v221
        %669 = vmatprep.subr.mxu0 %v214
        %670 = vmatpush1.msra.mxu0 %v213
        %671 = vmatprep.subr.mxu0 %v206
        %672 = vmatpush1.msra.mxu0 %v205
        %673 = vmatprep.subr.mxu0 %v198
        %674 = vmatpush1.msra.mxu0 %v197
        %675 = vmatprep.subr.mxu0 %v190
        %676 = vmatpush1.msra.mxu0 %v189
        %677 = vmatprep.subr.mxu0 0.0
        %678 = vmatpush2.msra.mxu0 0.0
        %679 = vmatprep.subr.mxu0 0.0
        %680 = vmatpush2.msra.mxu0 0.0
        %681 = vmatprep.subr.mxu0 0.0
        %682 = vmatpush2.msra.mxu0 0.0
        %683 = vmatprep.subr.mxu0 0.0
        %684 = vmatpush2.msra.mxu0 0.0
        %685 = vmatprep.subr.mxu0 0.0
        %686 = vmatpush2.msra.mxu0 0.0
        %687 = vmatprep.subr.mxu0 0.0
        %688 = vmatpush2.msra.mxu0 0.0
        %689 = vmatprep.subr.mxu0 0.0
        %690 = vmatpush2.msra.mxu0 0.0
        %691 = vmatprep.subr.mxu0 0.0
        %692 = vmatpush2.msra.mxu0 0.0
        %693 = vmatprep.subr.mxu0 0.0
        %694 = vmatpush2.msra.mxu0 0.0
        %695 = vmatprep.subr.mxu0 0.0
        %696 = vmatpush2.msra.mxu0 0.0
        %697 = vmatprep.subr.mxu0 0.0
        %698 = vmatpush2.msra.mxu0 0.0
        %699 = vmatprep.subr.mxu0 0.0
        %700 = vmatpush2.msra.mxu0 0.0
        %701 = vmatprep.subr.mxu0 0.0
        %702 = vmatpush2.msra.mxu0 0.0
        %703 = vmatprep.subr.mxu0 0.0
        %704 = vmatpush2.msra.mxu0 0.0
        %705 = vmatprep.subr.mxu0 0.0
        %706 = vmatpush2.msra.mxu0 0.0
        %707 = vmatprep.subr.mxu0 %v358
        %708 = vmatpush2.msra.mxu0 %v355
        %709 = vmatprep.mubr.f32.mxu0 %v321
        %710 = vmatmul.mubr.f32.gmra.mxu0 %v173
        %v711 = vpop.f32.mrf.mxu0
        %v712 = vadd.f32 0.0, %v711
        %v713 = vpop.f32.mrf.mxu0
        %v714 = vadd.f32 0.0, %v713
        %715 = vmatprep.mubr.f32.mxu0 %v324
        %716 = vmatmul.mubr.f32.gmra.mxu0 %v175
        %v717 = vpop.f32.mrf.mxu0
        %v718 = vadd.f32 0.0, %v717
        %v719 = vpop.f32.mrf.mxu0
        %v720 = vadd.f32 0.0, %v719
        %721 = vmatprep.mubr.f32.mxu0 %v327
        %722 = vmatmul.mubr.f32.gmra.mxu0 %v177
        %v723 = vpop.f32.mrf.mxu0
        %v724 = vadd.f32 0.0, %v723
        %v725 = vpop.f32.mrf.mxu0
        %v726 = vadd.f32 0.0, %v725
        %727 = vmatprep.mubr.f32.mxu0 %v330
        %728 = vmatmul.mubr.f32.gmra.mxu0 %v179
        %v729 = vpop.f32.mrf.mxu0
        %v730 = vadd.f32 0.0, %v729
        %v731 = vpop.f32.mrf.mxu0
        %v732 = vadd.f32 0.0, %v731
        %733 = vmatprep.mubr.f32.mxu0 %v333
        %734 = vmatmul.mubr.f32.gmra.mxu0 %v181
        %v735 = vpop.f32.mrf.mxu0
        %v736 = vadd.f32 0.0, %v735
        %v737 = vpop.f32.mrf.mxu0
        %v738 = vadd.f32 0.0, %v737
        %739 = vdwg.mxu0
        %740 = vst [vmem:[%s161] sm:$0xff] %v427
        %741 = vst [vmem:[%s161 + $0x8] sm:$0xff] %v429
        %742 = vst [vmem:[%s161 + $0x10] sm:$0xff] %v522
        %743 = vst [vmem:[%s161 + $0x18] sm:$0xff] %v524
        %744 = vst [vmem:[%s161 + $0x20] sm:$0xff] %v617
        %745 = vst [vmem:[%s161 + $0x28] sm:$0xff] %v619
        %746 = vst [vmem:[%s161 + $0x30] sm:$0xff] %v712
        %747 = vst [vmem:[%s161 + $0x38] sm:$0xff] %v714
        %748 = vst [vmem:[%s161 + $0x40] sm:$0xff] %v433
        %749 = vst [vmem:[%s161 + $0x48] sm:$0xff] %v435
        %750 = vst [vmem:[%s161 + $0x50] sm:$0xff] %v528
        %751 = vst [vmem:[%s161 + $0x58] sm:$0xff] %v530
        %752 = vst [vmem:[%s161 + $0x60] sm:$0xff] %v623
        %753 = vst [vmem:[%s161 + $0x68] sm:$0xff] %v625
        %754 = vst [vmem:[%s161 + $0x70] sm:$0xff] %v718
        %755 = vst [vmem:[%s161 + $0x78] sm:$0xff] %v720
        %756 = vst [vmem:[%s161 + $0x80] sm:$0xff] %v439
        %757 = vst [vmem:[%s161 + $0x88] sm:$0xff] %v441
        %758 = vst [vmem:[%s161 + $0x90] sm:$0xff] %v534
        %759 = vst [vmem:[%s161 + $0x98] sm:$0xff] %v536
        %760 = vst [vmem:[%s161 + $0xa0] sm:$0xff] %v629
        %761 = vst [vmem:[%s161 + $0xa8] sm:$0xff] %v631
        %762 = vst [vmem:[%s161 + $0xb0] sm:$0xff] %v724
        %763 = vst [vmem:[%s161 + $0xb8] sm:$0xff] %v726
        %764 = vst [vmem:[%s161 + $0xc0] sm:$0xff] %v445
        %765 = vst [vmem:[%s161 + $0xc8] sm:$0xff] %v447
        %766 = vst [vmem:[%s161 + $0xd0] sm:$0xff] %v540
        %767 = vst [vmem:[%s161 + $0xd8] sm:$0xff] %v542
        %768 = vst [vmem:[%s161 + $0xe0] sm:$0xff] %v635
        %769 = vst [vmem:[%s161 + $0xe8] sm:$0xff] %v637
        %770 = vst [vmem:[%s161 + $0xf0] sm:$0xff] %v730
        %771 = vst [vmem:[%s161 + $0xf8] sm:$0xff] %v732
        %772 = vst [vmem:[%s161 + $0x100] sm:$0xff] %v451
        %773 = vst [vmem:[%s161 + $0x108] sm:$0xff] %v453
        %774 = vst [vmem:[%s161 + $0x110] sm:$0xff] %v546
        %775 = vst [vmem:[%s161 + $0x118] sm:$0xff] %v548
        %776 = vst [vmem:[%s161 + $0x120] sm:$0xff] %v641
        %777 = vst [vmem:[%s161 + $0x128] sm:$0xff] %v643
        %778 = vst [vmem:[%s161 + $0x130] sm:$0xff] %v736
        %779 = vst [vmem:[%s161 + $0x138] sm:$0xff] %v738
        %s780 = sand.u32 %s87, 1
        %s781 = scalar_lea.sflag [#allocation3], %s780
        %s782 = sand.u32 %s87, 1
        %s783 = smul.addr %s782, 320
        %s784 = scalar_lea.vmem [#allocation2], %s783
        // Predicated region
        $region29: #{tpu_custom_call.1} parent=27 // pred_check
          %p785 = pneg %p97
        $region30: #{tpu_custom_call.1} parent=27 // pred_check_branch
          %787 = sbr.rel (%p785) target = $region32
        $region31: #{tpu_custom_call.1} parent=27 // pred_region
          %s788 = smul.u32 8, %s21
          %s790 = ssub.s32 5120, 5120
          %791 = vsyncadd %s781, %s790
          %s792 = smul.addr %s20, 40
          %s793 = sadd.s32 %s788, %s792
          %s794 = smul.addr %s793, 128
          %s795 = scalar_lea.hbm %s2, %s794
          %s796 = sshll.u32 %s784, 4
          %s797 = int_to_ptr.vmem [resolvable:$true] %s796
          %802 = dma.vmem_to_hbm [thread:$0]  %s797, 5120, %s795, %s781, 1024, 1024, 64
        $region32: #{tpu_custom_call.1} parent=27 // pred_fallthru
          _
      $region28: #{tpu_custom_call.1} parent=5 // pred_fallthru
        _
      %p803 = scmp.le.s32.totalorder 2, %s11
      // Predicated region
      $region33: #{tpu_custom_call.1} parent=5 // pred_check
        %p804 = pneg %p803
      $region34: #{tpu_custom_call.1} parent=5 // pred_check_branch
        %806 = sbr.rel (%p804) target = $region36
      $region35: #{tpu_custom_call.1} parent=5 // pred_region
        %s807 = ssub.s32 %s11, 2
        // Predicated region
        $region37: #{tpu_custom_call.1} parent=35 // pred_check
          %p808 = pneg %p103
        $region38: #{tpu_custom_call.1} parent=35 // pred_check_branch
          %810 = sbr.rel (%p808) target = $region40
        $region39: #{tpu_custom_call.1} parent=35 // pred_region
          %s811 = sand.u32 %s88, 1
          %s812 = scalar_lea.sflag [#allocation3], %s811
          %s813 = sand.u32 %s88, 1
          %s814 = smul.addr %s813, 320
          %s815 = scalar_lea.vmem [#allocation2], %s814
          %816 = dma.done %s812, 5120
        $region40: #{tpu_custom_call.1} parent=35 // pred_fallthru
          _
      $region36: #{tpu_custom_call.1} parent=5 // pred_fallthru
        _
    $region6: #{tpu_custom_call.1} parent=1 // loop_footer
      %s15 = sadd.s32 1, %s11
    $region7: #{tpu_custom_call.1} parent=1 // loop_footer_branch
      %10 = sbr.rel target = $region3
    $region8: #{tpu_custom_call.1} parent=1 // loop_exit
      _
    %817 = vsyncpa [#allocation3], 1
    %s818 = scalar_lea.sflag [#allocation3], 1
    %819 = vsyncpa %s818, 1

</llo_original>
